<compile_context>
chip_gen: v7x
topology: tpu7x:2x2x1
jax: 0.10.0
libtpu: 0.0.40
codegen_flags: <defaults>
</compile_context>

<pallas_src>
import jax
import jax.numpy as jnp
import numpy as np
from jax.experimental import pallas as pl
from jax.experimental.pallas import tpu as pltpu


def _round_up(x, m):
    return ((x + m - 1) // m) * m


def _cdiv(a, b):
    return -(-a // b)


def _vmem_capacity_bytes():
    try:
        return int(pltpu.get_tpu_info().vmem_capacity_bytes)
    except Exception:
        return 64 * 1024 * 1024  # conservative (v7x-class per-TC VMEM)


def _vmem_footprint(bm, tn, d_act, wsize, acts_size):
    """Rough per-step VMEM bytes (double-buffered I/O + single-buffered scratch)."""
    d_act_p = _round_up(d_act, 128)
    x_buf = 2 * bm * d_act_p * wsize          # x tile
    w_enc_buf = 2 * d_act_p * tn * wsize      # W_enc dict tile
    w_dec_buf = 2 * tn * d_act_p * wsize      # W_dec dict tile
    small = 2 * (3 * tn + d_act_p) * 4 * 8    # b_enc/thr/norm/b_dec (sublane-padded)
    recon_buf = 2 * bm * d_act_p * 4          # recon output (f32)
    acts_buf = 2 * bm * tn * acts_size        # acts output
    acc = bm * d_act_p * 4                    # f32 accumulator scratch
    xc = bm * d_act_p * wsize                 # centered-x scratch
    return x_buf + w_enc_buf + w_dec_buf + small + recon_buf + acts_buf + acc + xc


def _select_tiles(B, d_act, d_dict, wsize, acts_size, bm, tn, vmem_limit_bytes):
    capacity = _vmem_capacity_bytes()
    small_vmem = capacity < 96 * 1024 * 1024          # v7x-class (2 TC, 64 MiB/TC)
    if vmem_limit_bytes is None:
        vmem_limit_bytes = (capacity * 3) // 4        # ~96 MiB on v5e/v6e, ~48 MiB on v7x
    budget = int(vmem_limit_bytes * 0.85)             # headroom for Mosaic internals

    # ---- dict tile (K of the decode reduction) ----
    if tn is None:
        tn_gran = 256                                 # full 256-wide MXU passes (v6e/v7x)
        tn = 1024 if small_vmem else 2048
    else:
        tn_gran = 128
        tn = _round_up(max(tn, tn_gran), tn_gran)
    tn = min(tn, _round_up(d_dict, tn_gran))

    # ---- batch tile: the arithmetic-intensity knob ----
    if bm is None:
        bm_max = 512
        n_btiles = max(1, _cdiv(B, bm_max))
        # keep both TensorCores busy on 2-TC chips when the batch allows it
        if small_vmem and n_btiles == 1 and B >= 64:
            n_btiles = 2
        bm = _round_up(_cdiv(B, n_btiles), 16)        # minimal padding waste
    else:
        bm = _round_up(max(bm, 16), 16)
    bm = min(bm, _round_up(B, 16))

    # ---- shrink to fit VMEM: give up dict width before batch height ----
    while _vmem_footprint(bm, tn, d_act, wsize, acts_size) > budget:
        if tn > tn_gran:
            tn = max(tn_gran, _round_up(tn // 2, tn_gran))
        elif bm > 16:
            bm = max(16, _round_up(bm // 2, 16))
        else:
            break

    return bm, tn, int(vmem_limit_bytes)


# ---------------------------------------------------------------------------
# Pallas kernel: fused encode + decode, tiled over (batch, dict)
# ---------------------------------------------------------------------------
def _sae_fwd_kernel(x_ref, w_enc_ref, b_enc_ref, thr_ref, norm_ref,
                    w_dec_ref, b_dec_ref, recon_ref, acts_ref,
                    acc_ref, xc_ref):
    j = pl.program_id(1)                              # dict-tile index (reduction axis)

    @pl.when(j == 0)
    def _():
        # Centering hoisted out of the dict loop: done once per batch tile.
        xc_ref[...] = (x_ref[...].astype(jnp.float32)
                       - b_dec_ref[...]).astype(xc_ref.dtype)
        acc_ref[...] = jnp.zeros_like(acc_ref)

    # ---------------- encode (this dict tile) ----------------
    pre = jnp.dot(xc_ref[...], w_enc_ref[...],
                  preferred_element_type=jnp.float32) + b_enc_ref[...]
    # JumpReLU: relu(pre * (pre > thr)) == where(pre > thr, max(pre, 0), 0)
    f = jnp.where(pre > thr_ref[...], jnp.maximum(pre, 0.0), 0.0)

    # acts output = f * ||W_dec||_row (this dict tile)
    acts_ref[...] = (f * norm_ref[...]).astype(acts_ref.dtype)

    # ---------------- decode: recon = sum_j f_j @ W_dec_j + b_dec ----------
    # acts / ||W_dec||_row == f, so feed f straight into the decode matmul
    # (avoids a divide and the zero-norm NaN hazard).
    acc_ref[...] += jnp.dot(f.astype(w_dec_ref.dtype), w_dec_ref[...],
                            preferred_element_type=jnp.float32)

    @pl.when(j == pl.num_programs(1) - 1)
    def _():
        recon_ref[...] = (acc_ref[...] + b_dec_ref[...]).astype(recon_ref.dtype)


# ---------------------------------------------------------------------------
# Wrapper
# ---------------------------------------------------------------------------
def jumprelu_sae_forward(x, W_enc, b_enc, W_dec, b_dec, threshold, *,
                         bm=None, tn=None, compute_dtype=jnp.bfloat16,
                         acts_dtype=None, vmem_limit_bytes=None):
    """Returns (loss, x_reconstruct, acts, l2_loss, l1_loss) like the torch module."""
    B, D_act = x.shape
    D_dict = W_enc.shape[1]

    if acts_dtype is None:
        acts_dtype = compute_dtype                    # halve the acts HBM writeback
    wsize = jnp.dtype(compute_dtype).itemsize
    acts_size = jnp.dtype(acts_dtype).itemsize

    # Parameter-only preprocessing (plain JAX): per-row L2 norm of W_dec (f32).
    w_dec_norm = jnp.sqrt(jnp.sum(W_dec.astype(jnp.float32) ** 2, axis=1))

    # ---- generation-aware tile selection & padding -------------------------
    bm, tn, vmem_limit_bytes = _select_tiles(
        B, D_act, D_dict, wsize, acts_size, bm, tn, vmem_limit_bytes)

    B_pad = _round_up(B, bm)
    D_dict_pad = _round_up(D_dict, tn)
    pad_b = B_pad - B
    pad_d = D_dict_pad - D_dict

    x_p = jnp.pad(x, ((0, pad_b), (0, 0))) if pad_b else x
    W_enc_p = jnp.pad(W_enc, ((0, 0), (0, pad_d))) if pad_d else W_enc
    W_dec_p = jnp.pad(W_dec, ((0, pad_d), (0, 0))) if pad_d else W_dec
    b_enc_p = jnp.pad(b_enc, (0, pad_d)) if pad_d else b_enc
    # Padded dict columns get +inf threshold (never fire) and norm 1 (unused).
    thr_p = (jnp.pad(threshold, (0, pad_d), constant_values=jnp.inf)
             if pad_d else threshold)
    norm_p = (jnp.pad(w_dec_norm, (0, pad_d), constant_values=1.0)
              if pad_d else w_dec_norm)

    # bf16 operands on the MXU (f32 accumulation); small params stay f32.
    x_p = x_p.astype(compute_dtype)
    W_enc_p = W_enc_p.astype(compute_dtype)
    W_dec_p = W_dec_p.astype(compute_dtype)

    b_enc_2d = b_enc_p.reshape(1, D_dict_pad).astype(jnp.float32)
    thr_2d = thr_p.reshape(1, D_dict_pad).astype(jnp.float32)
    norm_2d = norm_p.reshape(1, D_dict_pad).astype(jnp.float32)
    b_dec_2d = b_dec.reshape(1, D_act).astype(jnp.float32)

    grid = (B_pad // bm, D_dict_pad // tn)
    n_btiles = grid[0]

    cost = pl.CostEstimate(
        flops=int(4 * B_pad * D_act * D_dict_pad),   # encode + decode matmuls
        transcendentals=0,
        bytes_accessed=int(
            x_p.size * wsize                                        # x read once
            + n_btiles * (W_enc_p.size + W_dec_p.size) * wsize      # weights re-streamed per batch tile
            + n_btiles * (3 * D_dict_pad + D_act) * 4               # small params per batch tile
            + B_pad * D_act * 4                                     # recon writeback (f32)
            + B_pad * D_dict_pad * acts_size),                      # acts writeback
    )

    recon, acts = pl.pallas_call(
        _sae_fwd_kernel,
        out_shape=(jax.ShapeDtypeStruct((B_pad, D_act), jnp.float32),
                   jax.ShapeDtypeStruct((B_pad, D_dict_pad), acts_dtype)),
        grid_spec=pltpu.PrefetchScalarGridSpec(
            num_scalar_prefetch=0,
            grid=grid,
            in_specs=[
                pl.BlockSpec((bm, D_act), lambda i, j: (i, 0)),   # x (const over j)
                pl.BlockSpec((D_act, tn), lambda i, j: (0, j)),   # W_enc dict tile
                pl.BlockSpec((1, tn), lambda i, j: (0, j)),       # b_enc
                pl.BlockSpec((1, tn), lambda i, j: (0, j)),       # threshold
                pl.BlockSpec((1, tn), lambda i, j: (0, j)),       # ||W_dec||_row
                pl.BlockSpec((tn, D_act), lambda i, j: (j, 0)),   # W_dec dict tile
                pl.BlockSpec((1, D_act), lambda i, j: (0, 0)),    # b_dec
            ],
            out_specs=[
                pl.BlockSpec((bm, D_act), lambda i, j: (i, 0)),   # recon (resident over j)
                pl.BlockSpec((bm, tn), lambda i, j: (i, j)),      # acts
            ],
            scratch_shapes=[
                pltpu.VMEM((bm, D_act), jnp.float32),             # recon accumulator
                pltpu.VMEM((bm, D_act), compute_dtype),           # centered x (hoisted)
            ],
        ),
        compiler_params=pltpu.CompilerParams(
            dimension_semantics=("parallel", "arbitrary"),
            vmem_limit_bytes=vmem_limit_bytes),
        cost_estimate=cost,
    )(x_p, W_enc_p, b_enc_2d, thr_2d, norm_2d, W_dec_p, b_dec_2d)

    recon = recon[:B]
    acts = acts[:B, :D_dict]

    # The torch module returns literal zeros for the loss terms.
    loss = 0
    l1_loss = 0
    l2_loss = 0
    return (loss, recon, acts, l2_loss, l1_loss)


# ---------------------------------------------------------------------------
# Pure-JAX reference (mirrors the torch module exactly)
# ---------------------------------------------------------------------------
def _reference_forward(x, W_enc, b_enc, W_dec, b_dec, threshold):
    xc = x - b_dec
    pre_jump = xc @ W_enc + b_enc
    f = jnp.maximum(pre_jump * (pre_jump > threshold), 0.0)
    norm = jnp.linalg.norm(W_dec, axis=1)
    acts = f * norm
    recon = (acts / norm) @ W_dec + b_dec
    return recon, acts


if __name__ == "__main__":
    key = jax.random.PRNGKey(0)
    k_x, k_we, k_be, k_bd, k_th = jax.random.split(key, 5)

    B = 24           # batch (non-multiple of the tile -> exercises padding)
    D_act = 128      # activation_dim
    D_dict = 512     # dict_dim

    W_enc = jax.random.normal(k_we, (D_act, D_dict), dtype=jnp.float32)
    W_enc = W_enc / jnp.linalg.norm(W_enc, axis=0, keepdims=True)   # unit columns
    W_dec = W_enc.T                                                 # clone().T
    b_enc = 0.1 * jax.random.normal(k_be, (D_dict,), dtype=jnp.float32)
    b_dec = 0.1 * jax.random.normal(k_bd, (D_act,), dtype=jnp.float32)
    threshold = jax.random.uniform(k_th, (D_dict,), dtype=jnp.float32,
                                   minval=0.0, maxval=0.2)
    x = jax.random.normal(k_x, (B, D_act), dtype=jnp.float32)

    # 1) f32 compute path, explicit tn=256 -> 2 dict tiles, exercising the
    #    K-reduction; checked against the pure-JAX reference.
    _, recon32, acts32, _, _ = jumprelu_sae_forward(
        x, W_enc, b_enc, W_dec, b_dec, threshold,
        tn=256, compute_dtype=jnp.float32)
    jax.block_until_ready((recon32, acts32))

    ref_recon, ref_acts = _reference_forward(x, W_enc, b_enc, W_dec, b_dec, threshold)
    np.testing.assert_allclose(np.asarray(acts32), np.asarray(ref_acts),
                               rtol=2e-3, atol=2e-3)
    np.testing.assert_allclose(np.asarray(recon32), np.asarray(ref_recon),
                               rtol=2e-3, atol=2e-3)

    # 2) bf16 performance path (defaults: auto tiles, bf16 acts writeback).
    #    Smoke test only — bf16 rounding can flip individual pre-activations
    #    across their threshold vs an f32 reference.
    _, recon16, acts16, _, _ = jumprelu_sae_forward(
        x, W_enc, b_enc, W_dec, b_dec, threshold, compute_dtype=jnp.bfloat16)
    jax.block_until_ready((recon16, acts16))
    assert recon16.shape == (B, D_act) and acts16.shape == (B, D_dict)
    assert acts16.dtype == jnp.bfloat16
    assert bool(jnp.all(jnp.isfinite(recon16.astype(jnp.float32))))
    assert bool(jnp.all(jnp.isfinite(acts16.astype(jnp.float32))))

    print("KERNEL_OK")
</pallas_src>

<mosaic_0001>
module attributes {stable_mosaic.version = 11 : i64} {
  func.func @_sae_fwd_kernel(%arg0: i32, %arg1: i32, %arg2: memref<32x128xf32, #tpu.memory_space<vmem>>, %arg3: memref<128x256xf32, #tpu.memory_space<vmem>>, %arg4: memref<1x256xf32, #tpu.memory_space<vmem>>, %arg5: memref<1x256xf32, #tpu.memory_space<vmem>>, %arg6: memref<1x256xf32, #tpu.memory_space<vmem>>, %arg7: memref<256x128xf32, #tpu.memory_space<vmem>>, %arg8: memref<1x128xf32, #tpu.memory_space<vmem>>, %arg9: memref<32x128xf32, #tpu.memory_space<vmem>>, %arg10: memref<32x256xf32, #tpu.memory_space<vmem>>, %arg11: memref<32x128xf32, #tpu.memory_space<vmem>>, %arg12: memref<32x128xf32, #tpu.memory_space<vmem>>) attributes {dimension_semantics = [#tpu.dimension_semantics<parallel>, #tpu.dimension_semantics<arbitrary>], iteration_bounds = array<i64: 1, 2>, scalar_prefetch = 0 : i64, scratch_operands = 2 : i64, tpu.core_type = #tpu.core_type<tc>, window_params = [{transform_indices = @transform_0, window_bounds = array<i64: 32, 128>}, {transform_indices = @transform_1, window_bounds = array<i64: 128, 256>}, {transform_indices = @transform_2, window_bounds = array<i64: 1, 256>}, {transform_indices = @transform_3, window_bounds = array<i64: 1, 256>}, {transform_indices = @transform_4, window_bounds = array<i64: 1, 256>}, {transform_indices = @transform_5, window_bounds = array<i64: 256, 128>}, {pipeline_mode = #tpu.pipeline_mode<synchronous>, transform_indices = @transform_6, window_bounds = array<i64: 1, 128>}, {transform_indices = @transform_7, window_bounds = array<i64: 32, 128>}, {transform_indices = @transform_8, window_bounds = array<i64: 32, 256>}]} {
    %c0_i32 = arith.constant 0 : i32
    %0 = arith.cmpi eq, %arg1, %c0_i32 : i32
    %1 = arith.extui %0 : i1 to i32
    %c0_i32_0 = arith.constant 0 : i32
    %2 = arith.cmpi ne, %1, %c0_i32_0 : i32
    scf.if %2 {
      %c0_22 = arith.constant 0 : index
      %c0_23 = arith.constant 0 : index
      %28 = vector.load %arg2[%c0_22, %c0_23] : memref<32x128xf32, #tpu.memory_space<vmem>>, vector<32x128xf32>
      %c0_24 = arith.constant 0 : index
      %c0_25 = arith.constant 0 : index
      %29 = vector.load %arg8[%c0_24, %c0_25] : memref<1x128xf32, #tpu.memory_space<vmem>>, vector<1x128xf32>
      %30 = vector.broadcast %29 : vector<1x128xf32> to vector<32x128xf32>
      %31 = arith.subf %28, %30 : vector<32x128xf32>
      %c0_26 = arith.constant 0 : index
      %c0_27 = arith.constant 0 : index
      %32 = vector.load %arg12[%c0_26, %c0_27] : memref<32x128xf32, #tpu.memory_space<vmem>>, vector<32x128xf32>
      tpu.vector_store %arg12[%c0_26, %c0_27], %31 {strides = array<i32>} : memref<32x128xf32, #tpu.memory_space<vmem>>, vector<32x128xf32>,
      %cst_28 = arith.constant 0.000000e+00 : f32
      %33 = vector.broadcast %cst_28 : f32 to vector<32x128xf32>
      %c0_29 = arith.constant 0 : index
      %c0_30 = arith.constant 0 : index
      %34 = vector.load %arg11[%c0_29, %c0_30] : memref<32x128xf32, #tpu.memory_space<vmem>>, vector<32x128xf32>
      tpu.vector_store %arg11[%c0_29, %c0_30], %33 {strides = array<i32>} : memref<32x128xf32, #tpu.memory_space<vmem>>, vector<32x128xf32>,
    } else {
    }
    %c0 = arith.constant 0 : index
    %c0_1 = arith.constant 0 : index
    %3 = vector.load %arg12[%c0, %c0_1] : memref<32x128xf32, #tpu.memory_space<vmem>>, vector<32x128xf32>
    %c0_2 = arith.constant 0 : index
    %c0_3 = arith.constant 0 : index
    %4 = vector.load %arg3[%c0_2, %c0_3] : memref<128x256xf32, #tpu.memory_space<vmem>>, vector<128x256xf32>
    %cst = arith.constant dense<0.000000e+00> : vector<32x256xf32>
    %5 = tpu.matmul %3, %4, %cst {dimension_numbers = #tpu.dot_dimension_numbers<[1], [0], [0], [1], [0, 0, 1, 1], [], []>} : vector<32x128xf32>, vector<128x256xf32>, vector<32x256xf32> -> vector<32x256xf32>
    %c0_4 = arith.constant 0 : index
    %c0_5 = arith.constant 0 : index
    %6 = vector.load %arg4[%c0_4, %c0_5] : memref<1x256xf32, #tpu.memory_space<vmem>>, vector<1x256xf32>
    %7 = vector.broadcast %6 : vector<1x256xf32> to vector<32x256xf32>
    %8 = arith.addf %5, %7 : vector<32x256xf32>
    %c0_6 = arith.constant 0 : index
    %c0_7 = arith.constant 0 : index
    %9 = vector.load %arg5[%c0_6, %c0_7] : memref<1x256xf32, #tpu.memory_space<vmem>>, vector<1x256xf32>
    %10 = vector.broadcast %9 : vector<1x256xf32> to vector<32x256xf32>
    %11 = arith.cmpf ogt, %8, %10 : vector<32x256xf32>
    %cst_8 = arith.constant 0.000000e+00 : f32
    %12 = vector.broadcast %cst_8 : f32 to vector<32x256xf32>
    %13 = arith.maximumf %8, %12 : vector<32x256xf32>
    %cst_9 = arith.constant 0.000000e+00 : f32
    %14 = vector.broadcast %cst_9 : f32 to vector<32x256xf32>
    %15 = arith.select %11, %13, %14 : vector<32x256xi1>, vector<32x256xf32>
    %c0_10 = arith.constant 0 : index
    %c0_11 = arith.constant 0 : index
    %16 = vector.load %arg6[%c0_10, %c0_11] : memref<1x256xf32, #tpu.memory_space<vmem>>, vector<1x256xf32>
    %17 = vector.broadcast %16 : vector<1x256xf32> to vector<32x256xf32>
    %18 = arith.mulf %15, %17 : vector<32x256xf32>
    %c0_12 = arith.constant 0 : index
    %c0_13 = arith.constant 0 : index
    %19 = vector.load %arg10[%c0_12, %c0_13] : memref<32x256xf32, #tpu.memory_space<vmem>>, vector<32x256xf32>
    tpu.vector_store %arg10[%c0_12, %c0_13], %18 {strides = array<i32>} : memref<32x256xf32, #tpu.memory_space<vmem>>, vector<32x256xf32>,
    %c0_14 = arith.constant 0 : index
    %c0_15 = arith.constant 0 : index
    %20 = vector.load %arg11[%c0_14, %c0_15] : memref<32x128xf32, #tpu.memory_space<vmem>>, vector<32x128xf32>
    %c0_16 = arith.constant 0 : index
    %c0_17 = arith.constant 0 : index
    %21 = vector.load %arg7[%c0_16, %c0_17] : memref<256x128xf32, #tpu.memory_space<vmem>>, vector<256x128xf32>
    %cst_18 = arith.constant dense<0.000000e+00> : vector<32x128xf32>
    %22 = tpu.matmul %15, %21, %cst_18 {dimension_numbers = #tpu.dot_dimension_numbers<[1], [0], [0], [1], [0, 0, 1, 1], [], []>} : vector<32x256xf32>, vector<256x128xf32>, vector<32x128xf32> -> vector<32x128xf32>
    %23 = arith.addf %20, %22 : vector<32x128xf32>
    %c0_19 = arith.constant 0 : index
    %c0_20 = arith.constant 0 : index
    %24 = vector.load %arg11[%c0_19, %c0_20] : memref<32x128xf32, #tpu.memory_space<vmem>>, vector<32x128xf32>
    tpu.vector_store %arg11[%c0_19, %c0_20], %23 {strides = array<i32>} : memref<32x128xf32, #tpu.memory_space<vmem>>, vector<32x128xf32>,
    %c1_i32 = arith.constant 1 : i32
    %25 = arith.cmpi eq, %arg1, %c1_i32 : i32
    %26 = arith.extui %25 : i1 to i32
    %c0_i32_21 = arith.constant 0 : i32
    %27 = arith.cmpi ne, %26, %c0_i32_21 : i32
    scf.if %27 {
      %c0_22 = arith.constant 0 : index
      %c0_23 = arith.constant 0 : index
      %28 = vector.load %arg11[%c0_22, %c0_23] : memref<32x128xf32, #tpu.memory_space<vmem>>, vector<32x128xf32>
      %c0_24 = arith.constant 0 : index
      %c0_25 = arith.constant 0 : index
      %29 = vector.load %arg8[%c0_24, %c0_25] : memref<1x128xf32, #tpu.memory_space<vmem>>, vector<1x128xf32>
      %30 = vector.broadcast %29 : vector<1x128xf32> to vector<32x128xf32>
      %31 = arith.addf %28, %30 : vector<32x128xf32>
      %c0_26 = arith.constant 0 : index
      %c0_27 = arith.constant 0 : index
      %32 = vector.load %arg9[%c0_26, %c0_27] : memref<32x128xf32, #tpu.memory_space<vmem>>, vector<32x128xf32>
      tpu.vector_store %arg9[%c0_26, %c0_27], %31 {strides = array<i32>} : memref<32x128xf32, #tpu.memory_space<vmem>>, vector<32x128xf32>,
    } else {
    }
    return
  }
  func.func @transform_0(%arg0: i32, %arg1: i32) -> (i32, i32) {
    %c0_i32 = arith.constant 0 : i32
    %c0_i32_0 = arith.constant 0 : i32
    return %arg0, %c0_i32 : i32, i32
  }
  func.func @transform_1(%arg0: i32, %arg1: i32) -> (i32, i32) {
    %c0_i32 = arith.constant 0 : i32
    %c0_i32_0 = arith.constant 0 : i32
    return %c0_i32, %arg1 : i32, i32
  }
  func.func @transform_2(%arg0: i32, %arg1: i32) -> (i32, i32) {
    %c0_i32 = arith.constant 0 : i32
    %c0_i32_0 = arith.constant 0 : i32
    return %c0_i32, %arg1 : i32, i32
  }
  func.func @transform_3(%arg0: i32, %arg1: i32) -> (i32, i32) {
    %c0_i32 = arith.constant 0 : i32
    %c0_i32_0 = arith.constant 0 : i32
    return %c0_i32, %arg1 : i32, i32
  }
  func.func @transform_4(%arg0: i32, %arg1: i32) -> (i32, i32) {
    %c0_i32 = arith.constant 0 : i32
    %c0_i32_0 = arith.constant 0 : i32
    return %c0_i32, %arg1 : i32, i32
  }
  func.func @transform_5(%arg0: i32, %arg1: i32) -> (i32, i32) {
    %c0_i32 = arith.constant 0 : i32
    %c0_i32_0 = arith.constant 0 : i32
    return %arg1, %c0_i32 : i32, i32
  }
  func.func @transform_6(%arg0: i32, %arg1: i32) -> (i32, i32) {
    %c0_i32 = arith.constant 0 : i32
    %c0_i32_0 = arith.constant 0 : i32
    %c0_i32_1 = arith.constant 0 : i32
    return %c0_i32, %c0_i32_0 : i32, i32
  }
  func.func @transform_7(%arg0: i32, %arg1: i32) -> (i32, i32) {
    %c0_i32 = arith.constant 0 : i32
    %c0_i32_0 = arith.constant 0 : i32
    return %arg0, %c0_i32 : i32, i32
  }
  func.func @transform_8(%arg0: i32, %arg1: i32) -> (i32, i32) {
    %c0_i32 = arith.constant 0 : i32
    return %arg0, %arg1 : i32, i32
  }
}

</mosaic_0001>

<llo_original>
// kernel: tpu_custom_call.1
$region0: #{tpu_custom_call.1}
  #allocation0 [shape = 'u32[]', space=smem, size = 0x4, offset = 0x4, fixed_abs, tag = 'smem constant byte address 0x4 - core index']
  #allocation1 [shape = 'u32[144,128]{1,0:T(1,128)}', space=vmem, size = 0x12000, scoped, tag = 'internal scratch']
  #allocation2 [shape = 'f32[32,128]{1,0:T(8,128)}', space=vmem, size = 0x4000, scoped, tag = 'scratch operand']
  #allocation3 [shape = 'f32[32,128]{1,0:T(8,128)}', space=vmem, size = 0x4000, scoped, tag = 'scratch operand']
  %s0 = inlined_call_operand.hbm [shape: f32[32,128], index: 0, kind: input, shape index: {}]
  %s1 = inlined_call_operand.hbm [shape: f32[128,512], index: 1, kind: input, shape index: {}]
  %s2 = inlined_call_operand.vmem [shape: f32[1,512], index: 2, kind: input, shape index: {}]
  %s3 = inlined_call_operand.vmem [shape: f32[1,512], index: 3, kind: input, shape index: {}]
  %s4 = inlined_call_operand.vmem [shape: f32[1,512], index: 4, kind: input, shape index: {}]
  %s5 = inlined_call_operand.hbm [shape: f32[512,128], index: 5, kind: input, shape index: {}]
  %s6 = inlined_call_operand.vmem [shape: f32[1,128], index: 6, kind: input, shape index: {}]
  %s7 = inlined_call_operand.hbm [shape: f32[32,128], index: 7, kind: output, shape index: {0}]
  %s8 = inlined_call_operand.hbm [shape: f32[32,512], index: 8, kind: output, shape index: {1}]
  %9 = xla_tuple %s7, %s8
  %s10 = sld [smem:[#allocation0]]
  $region89: #{tpu_custom_call.1} parent=0
    _
  %s12 = ssub.s32 1, %s10
  %s13 = scalar_select 0, %s12, %s10
  $region1: #{tpu_custom_call.1} parent=0
    #allocation4 [shape = 'u8[16384]{0}', space=vmem, size = 0x4000, scoped, tag = 'input window, operand 0, single buffered']
    #allocation5 [shape = 's32[2]{0}', space=sflag, size = 0x8, scoped, tag = 'scoped memory for tpu_custom_call.1']
    #allocation6 [shape = 's32[2]{0}', space=sflag, size = 0x8, scoped, tag = 'scoped memory for tpu_custom_call.1']
    #allocation7 [shape = 'u8[262144]{0}', space=vmem, size = 0x40000, scoped, tag = 'input window, operand 1']
    #allocation8 [shape = 's32[2]{0}', space=sflag, size = 0x8, scoped, tag = 'scoped memory for tpu_custom_call.1']
    #allocation9 [shape = 'u8[262144]{0}', space=vmem, size = 0x40000, scoped, tag = 'input window, operand 5']
    #allocation10 [shape = 'u8[16384]{0}', space=vmem, size = 0x4000, scoped, tag = 'output window, operand 0, single buffered']
    #allocation11 [shape = 'u8[65536]{0}', space=vmem, size = 0x10000, scoped, tag = 'output window, operand 1']
    #allocation12 [shape = 's32[2]{0}', space=sflag, size = 0x8, scoped, tag = 'scoped memory for tpu_custom_call.1']
    %14 = vsyncpa [#allocation5], 0
    %15 = vsyncpa [#allocation8], 0
    %s16 = scalar_lea.sflag [#allocation8], 1
    %17 = vsyncpa %s16, 0
    %18 = vsyncpa [#allocation6], 0
    %19 = vsyncpa [#allocation12], 0
    %s20 = scalar_lea.sflag [#allocation12], 1
    %21 = vsyncpa %s20, 0
    loop: start=0, step=1, limit=4
    $region2: #{tpu_custom_call.1} parent=1 // loop_pre_header
      _
    $region3: #{tpu_custom_call.1} parent=1 // loop_header
      %s23 = sphi 0, %s27
      %p24 = scmp.ge.s32.totalorder %s23, 4
      %s30 = sphi 0, %s42
      %s31 = sphi 0, %s38
      %s32 = sphi 0, %s30
      %s33 = sphi 0, %s31
      %s34 = sphi 0, %s32
      %s35 = sphi 0, %s33
      %s45 = sphi 0, %s47
      %s48 = sphi 0, %s45
      %s49 = sphi 0, %s48
      %s65 = sphi 0, %s49
      %s71 = sphi 0, %s73
      %s74 = sphi 0, %s71
      %s75 = sphi 0, %s74
      %s91 = sphi 0, %s75
      %s97 = sphi 0, %s99
      %s100 = sphi 0, %s97
      %s101 = sphi 0, %s100
      %s117 = sphi 0, %s101
      %s123 = sphi 0, %s125
      %s126 = sphi 0, %s123
      %s127 = sphi 0, %s126
      %s143 = sphi 0, %s127
      %s149 = sphi 0, %s151
      %s152 = sphi 0, %s149
      %s153 = sphi 0, %s152
      %s169 = sphi 0, %s153
      %s175 = sphi 0, %s177
      %s178 = sphi 0, %s175
      %s179 = sphi 0, %s178
      %s195 = sphi 0, %s179
      %s199 = sphi 0, %s199
      %s201 = sphi 0, %s199
      %s202 = sphi 0, %s201
      %s216 = sphi 0, %s202
      %s222 = sphi 0, %s224
      %s225 = sphi 0, %s222
      %s226 = sphi 0, %s225
      %s242 = sphi 0, %s226
      %s250 = sphi 0, %s252
      %s253 = sphi 0, %s250
      %s254 = sphi 0, %s253
      %s270 = sphi 0, %s254
    $region4: #{tpu_custom_call.1} parent=1 // loop_header_branch
      %26 = sbr.rel (%p24) target = $region8
    $region5: #{tpu_custom_call.1} parent=1 // loop_body
      %s28 = ssub.s32 %s23, 1
      %s29 = ssub.s32 %s23, 2
      %s36 = sadd.s32 1, %s31
      %p37 = scmp.ge.s32.totalorder %s36, 2
      %s38 = scalar_select %p37, 0, %s36
      %s39 = sadd.s32 1, %s30
      %s40 = scalar_select %p37, %s39, %s30
      %p41 = scmp.ge.s32.totalorder %s40, 1
      %s42 = scalar_select %p41, 0, %s40
      %s43 = ssub.s32 %s30, %s42
      %p44 = scmp.eq.s32.totalorder %s43, 0
      %s46 = sadd.s32 %s45, 1
      %s47 = scalar_select %p44, %s45, %s46
      %p50 = pneg %p44
      %p51 = scmp.eq.s32.totalorder %s23, 1
      %p52 = por %p50, %p51
      %p53 = scmp.ne.s32.totalorder %s45, %s48
      %p54 = scmp.eq.s32.totalorder %s23, 0
      %p55 = por %p53, %p54
      %p56 = scmp.ne.s32.totalorder %s45, %s48
      %p57 = scmp.eq.s32.totalorder %s28, 1
      %p58 = por %p56, %p57
      %p59 = scmp.ne.s32.totalorder %s48, %s49
      %p60 = scmp.eq.s32.totalorder %s28, 0
      %p61 = por %p59, %p60
      %p62 = scmp.ne.s32.totalorder %s48, %s49
      %p63 = scmp.eq.s32.totalorder %s29, 1
      %p64 = por %p62, %p63
      %p66 = scmp.ne.s32.totalorder %s49, %s65
      %p67 = scmp.eq.s32.totalorder %s29, 0
      %p68 = por %p66, %p67
      %s69 = ssub.s32 %s31, %s38
      %p70 = scmp.eq.s32.totalorder %s69, 0
      %s72 = sadd.s32 %s71, 1
      %s73 = scalar_select %p70, %s71, %s72
      %p76 = pneg %p70
      %p77 = scmp.eq.s32.totalorder %s23, 1
      %p78 = por %p76, %p77
      %p79 = scmp.ne.s32.totalorder %s71, %s74
      %p80 = scmp.eq.s32.totalorder %s23, 0
      %p81 = por %p79, %p80
      %p82 = scmp.ne.s32.totalorder %s71, %s74
      %p83 = scmp.eq.s32.totalorder %s28, 1
      %p84 = por %p82, %p83
      %p85 = scmp.ne.s32.totalorder %s74, %s75
      %p86 = scmp.eq.s32.totalorder %s28, 0
      %p87 = por %p85, %p86
      %p88 = scmp.ne.s32.totalorder %s74, %s75
      %p89 = scmp.eq.s32.totalorder %s29, 1
      %p90 = por %p88, %p89
      %p92 = scmp.ne.s32.totalorder %s75, %s91
      %p93 = scmp.eq.s32.totalorder %s29, 0
      %p94 = por %p92, %p93
      %s95 = ssub.s32 %s31, %s38
      %p96 = scmp.eq.s32.totalorder %s95, 0
      %s98 = sadd.s32 %s97, 1
      %s99 = scalar_select %p96, %s97, %s98
      %p102 = pneg %p96
      %p103 = scmp.eq.s32.totalorder %s23, 1
      %p104 = por %p102, %p103
      %p105 = scmp.ne.s32.totalorder %s97, %s100
      %p106 = scmp.eq.s32.totalorder %s23, 0
      %p107 = por %p105, %p106
      %p108 = scmp.ne.s32.totalorder %s97, %s100
      %p109 = scmp.eq.s32.totalorder %s28, 1
      %p110 = por %p108, %p109
      %p111 = scmp.ne.s32.totalorder %s100, %s101
      %p112 = scmp.eq.s32.totalorder %s28, 0
      %p113 = por %p111, %p112
      %p114 = scmp.ne.s32.totalorder %s100, %s101
      %p115 = scmp.eq.s32.totalorder %s29, 1
      %p116 = por %p114, %p115
      %p118 = scmp.ne.s32.totalorder %s101, %s117
      %p119 = scmp.eq.s32.totalorder %s29, 0
      %p120 = por %p118, %p119
      %s121 = ssub.s32 %s31, %s38
      %p122 = scmp.eq.s32.totalorder %s121, 0
      %s124 = sadd.s32 %s123, 1
      %s125 = scalar_select %p122, %s123, %s124
      %p128 = pneg %p122
      %p129 = scmp.eq.s32.totalorder %s23, 1
      %p130 = por %p128, %p129
      %p131 = scmp.ne.s32.totalorder %s123, %s126
      %p132 = scmp.eq.s32.totalorder %s23, 0
      %p133 = por %p131, %p132
      %p134 = scmp.ne.s32.totalorder %s123, %s126
      %p135 = scmp.eq.s32.totalorder %s28, 1
      %p136 = por %p134, %p135
      %p137 = scmp.ne.s32.totalorder %s126, %s127
      %p138 = scmp.eq.s32.totalorder %s28, 0
      %p139 = por %p137, %p138
      %p140 = scmp.ne.s32.totalorder %s126, %s127
      %p141 = scmp.eq.s32.totalorder %s29, 1
      %p142 = por %p140, %p141
      %p144 = scmp.ne.s32.totalorder %s127, %s143
      %p145 = scmp.eq.s32.totalorder %s29, 0
      %p146 = por %p144, %p145
      %s147 = ssub.s32 %s31, %s38
      %p148 = scmp.eq.s32.totalorder %s147, 0
      %s150 = sadd.s32 %s149, 1
      %s151 = scalar_select %p148, %s149, %s150
      %p154 = pneg %p148
      %p155 = scmp.eq.s32.totalorder %s23, 1
      %p156 = por %p154, %p155
      %p157 = scmp.ne.s32.totalorder %s149, %s152
      %p158 = scmp.eq.s32.totalorder %s23, 0
      %p159 = por %p157, %p158
      %p160 = scmp.ne.s32.totalorder %s149, %s152
      %p161 = scmp.eq.s32.totalorder %s28, 1
      %p162 = por %p160, %p161
      %p163 = scmp.ne.s32.totalorder %s152, %s153
      %p164 = scmp.eq.s32.totalorder %s28, 0
      %p165 = por %p163, %p164
      %p166 = scmp.ne.s32.totalorder %s152, %s153
      %p167 = scmp.eq.s32.totalorder %s29, 1
      %p168 = por %p166, %p167
      %p170 = scmp.ne.s32.totalorder %s153, %s169
      %p171 = scmp.eq.s32.totalorder %s29, 0
      %p172 = por %p170, %p171
      %s173 = ssub.s32 %s31, %s38
      %p174 = scmp.eq.s32.totalorder %s173, 0
      %s176 = sadd.s32 %s175, 1
      %s177 = scalar_select %p174, %s175, %s176
      %p180 = pneg %p174
      %p181 = scmp.eq.s32.totalorder %s23, 1
      %p182 = por %p180, %p181
      %p183 = scmp.ne.s32.totalorder %s175, %s178
      %p184 = scmp.eq.s32.totalorder %s23, 0
      %p185 = por %p183, %p184
      %p186 = scmp.ne.s32.totalorder %s175, %s178
      %p187 = scmp.eq.s32.totalorder %s28, 1
      %p188 = por %p186, %p187
      %p189 = scmp.ne.s32.totalorder %s178, %s179
      %p190 = scmp.eq.s32.totalorder %s28, 0
      %p191 = por %p189, %p190
      %p192 = scmp.ne.s32.totalorder %s178, %s179
      %p193 = scmp.eq.s32.totalorder %s29, 1
      %p194 = por %p192, %p193
      %p196 = scmp.ne.s32.totalorder %s179, %s195
      %p197 = scmp.eq.s32.totalorder %s29, 0
      %p198 = por %p196, %p197
      %s200 = sadd.s32 %s199, 1
      %p203 = scmp.eq.s32.totalorder %s23, 1
      %p204 = scmp.ne.s32.totalorder %s199, %s201
      %p205 = scmp.eq.s32.totalorder %s23, 0
      %p206 = por %p204, %p205
      %p207 = scmp.ne.s32.totalorder %s199, %s201
      %p208 = scmp.eq.s32.totalorder %s28, 1
      %p209 = por %p207, %p208
      %p210 = scmp.ne.s32.totalorder %s201, %s202
      %p211 = scmp.eq.s32.totalorder %s28, 0
      %p212 = por %p210, %p211
      %p213 = scmp.ne.s32.totalorder %s201, %s202
      %p214 = scmp.eq.s32.totalorder %s29, 1
      %p215 = por %p213, %p214
      %p217 = scmp.ne.s32.totalorder %s202, %s216
      %p218 = scmp.eq.s32.totalorder %s29, 0
      %p219 = por %p217, %p218
      %s220 = ssub.s32 %s30, %s42
      %p221 = scmp.eq.s32.totalorder %s220, 0
      %s223 = sadd.s32 %s222, 1
      %s224 = scalar_select %p221, %s222, %s223
      %p227 = pneg %p221
      %p228 = scmp.eq.s32.totalorder %s23, 1
      %p229 = por %p227, %p228
      %p230 = scmp.ne.s32.totalorder %s222, %s225
      %p231 = scmp.eq.s32.totalorder %s23, 0
      %p232 = por %p230, %p231
      %p233 = scmp.ne.s32.totalorder %s222, %s225
      %p234 = scmp.eq.s32.totalorder %s28, 1
      %p235 = por %p233, %p234
      %p236 = scmp.ne.s32.totalorder %s225, %s226
      %p237 = scmp.eq.s32.totalorder %s28, 0
      %p238 = por %p236, %p237
      %p239 = scmp.ne.s32.totalorder %s225, %s226
      %p240 = scmp.eq.s32.totalorder %s29, 1
      %p241 = por %p239, %p240
      %p243 = scmp.ne.s32.totalorder %s226, %s242
      %p244 = scmp.eq.s32.totalorder %s29, 0
      %p245 = por %p243, %p244
      %s246 = ssub.s32 %s30, %s42
      %s247 = ssub.s32 %s31, %s38
      %s248 = sor.u32 %s246, %s247
      %p249 = scmp.eq.s32.totalorder %s248, 0
      %s251 = sadd.s32 %s250, 1
      %s252 = scalar_select %p249, %s250, %s251
      %p255 = pneg %p249
      %p256 = scmp.eq.s32.totalorder %s23, 1
      %p257 = por %p255, %p256
      %p258 = scmp.ne.s32.totalorder %s250, %s253
      %p259 = scmp.eq.s32.totalorder %s23, 0
      %p260 = por %p258, %p259
      %p261 = scmp.ne.s32.totalorder %s250, %s253
      %p262 = scmp.eq.s32.totalorder %s28, 1
      %p263 = por %p261, %p262
      %p264 = scmp.ne.s32.totalorder %s253, %s254
      %p265 = scmp.eq.s32.totalorder %s28, 0
      %p266 = por %p264, %p265
      %p267 = scmp.ne.s32.totalorder %s253, %s254
      %p268 = scmp.eq.s32.totalorder %s29, 1
      %p269 = por %p267, %p268
      %p271 = scmp.ne.s32.totalorder %s254, %s270
      %p272 = scmp.eq.s32.totalorder %s29, 0
      %p273 = por %p271, %p272
      %p274 = scmp.le.s32.totalorder 1, %s23
      %p275 = scmp.lt.s32.totalorder %s23, 3
      %p276 = pnand %p274, %p275
      %p277 = pneg %p276
      // Predicated region
      $region9: #{tpu_custom_call.1} parent=5 // pred_check
        _
      $region10: #{tpu_custom_call.1} parent=5 // pred_check_branch
        %279 = sbr.rel (%p276) target = $region12
      $region11: #{tpu_custom_call.1} parent=5 // pred_region
        %s280 = ssub.s32 %s23, 1
        // Predicated region
        $region13: #{tpu_custom_call.1} parent=11 // pred_check
          %p281 = pneg %p61
        $region14: #{tpu_custom_call.1} parent=11 // pred_check_branch
          %283 = sbr.rel (%p281) target = $region16
        $region15: #{tpu_custom_call.1} parent=11 // pred_region
          %s284 = smul.u32 4, %s32
          %s286 = ssub.s32 512, 512
          %287 = vsyncadd [#allocation5], %s286
          %s288 = smul.addr %s284, 128
          %s289 = scalar_lea.hbm %s0, %s288
          %s290 = sshll.u32 [#allocation4], 4
          %s291 = int_to_ptr.vmem [resolvable:$true] %s290
          %296 = dma.hbm_to_vmem [thread:$0]  %s289, 512, %s291, [#allocation5], 128, 128, 8
        $region16: #{tpu_custom_call.1} parent=11 // pred_fallthru
          _
        // Predicated region
        $region17: #{tpu_custom_call.1} parent=11 // pred_check
          %p297 = pneg %p212
        $region18: #{tpu_custom_call.1} parent=11 // pred_check_branch
          %299 = sbr.rel (%p297) target = $region20
        $region19: #{tpu_custom_call.1} parent=11 // pred_region
          _
        $region20: #{tpu_custom_call.1} parent=11 // pred_fallthru
          _
      $region12: #{tpu_custom_call.1} parent=5 // pred_fallthru
        _
      %p300 = scmp.lt.s32.totalorder %s23, 2
      // Predicated region
      $region21: #{tpu_custom_call.1} parent=5 // pred_check
        %p301 = pneg %p300
      $region22: #{tpu_custom_call.1} parent=5 // pred_check_branch
        %303 = sbr.rel (%p301) target = $region24
      $region23: #{tpu_custom_call.1} parent=5 // pred_region
        // Predicated region
        $region25: #{tpu_custom_call.1} parent=23 // pred_check
          %p304 = pneg %p81
        $region26: #{tpu_custom_call.1} parent=23 // pred_check_branch
          %306 = sbr.rel (%p304) target = $region28
        $region27: #{tpu_custom_call.1} parent=23 // pred_region
          %s307 = sand.u32 %s23, 1
          %s308 = scalar_lea.sflag [#allocation8], %s307
          %s309 = sand.u32 %s71, 1
          %s310 = smul.addr %s309, 256
          %s311 = scalar_lea.vmem [#allocation7], %s310
          %s312 = smul.u32 2, %s31
          %s314 = ssub.s32 4096, 4096
          %315 = vsyncadd %s308, %s314
          %s316 = smul.addr %s312, 128
          %s317 = scalar_lea.hbm %s1, %s316
          %s318 = sshll.u32 %s311, 4
          %s319 = int_to_ptr.vmem [resolvable:$true] %s318
          %324 = dma.hbm_to_vmem [thread:$0]  %s317, 4096, %s319, %s308, 512, 256, 16
        $region28: #{tpu_custom_call.1} parent=23 // pred_fallthru
          _
        // Predicated region
        $region29: #{tpu_custom_call.1} parent=23 // pred_check
          %p325 = pneg %p107
        $region30: #{tpu_custom_call.1} parent=23 // pred_check_branch
          %327 = sbr.rel (%p325) target = $region32
        $region31: #{tpu_custom_call.1} parent=23 // pred_region
          %s328 = smul.u32 2, %s31
          %p329 = scmp.lt.s32.totalorder %s328, 3
          %s330 = scalar_select %p329, %s328, 3
          %s331 = scalar_lea.vmem %s2, %s330
          %s332 = smul.u32 2, %s31
        $region32: #{tpu_custom_call.1} parent=23 // pred_fallthru
          _
        // Predicated region
        $region33: #{tpu_custom_call.1} parent=23 // pred_check
          %p333 = pneg %p133
        $region34: #{tpu_custom_call.1} parent=23 // pred_check_branch
          %335 = sbr.rel (%p333) target = $region36
        $region35: #{tpu_custom_call.1} parent=23 // pred_region
          %s336 = smul.u32 2, %s31
          %p337 = scmp.lt.s32.totalorder %s336, 3
          %s338 = scalar_select %p337, %s336, 3
          %s339 = scalar_lea.vmem %s3, %s338
          %s340 = smul.u32 2, %s31
        $region36: #{tpu_custom_call.1} parent=23 // pred_fallthru
          _
        // Predicated region
        $region37: #{tpu_custom_call.1} parent=23 // pred_check
          %p341 = pneg %p159
        $region38: #{tpu_custom_call.1} parent=23 // pred_check_branch
          %343 = sbr.rel (%p341) target = $region40
        $region39: #{tpu_custom_call.1} parent=23 // pred_region
          %s344 = smul.u32 2, %s31
          %p345 = scmp.lt.s32.totalorder %s344, 3
          %s346 = scalar_select %p345, %s344, 3
          %s347 = scalar_lea.vmem %s4, %s346
          %s348 = smul.u32 2, %s31
        $region40: #{tpu_custom_call.1} parent=23 // pred_fallthru
          _
        // Predicated region
        $region41: #{tpu_custom_call.1} parent=23 // pred_check
          %p349 = pneg %p185
        $region42: #{tpu_custom_call.1} parent=23 // pred_check_branch
          %351 = sbr.rel (%p349) target = $region44
        $region43: #{tpu_custom_call.1} parent=23 // pred_region
          %s352 = sand.u32 %s23, 1
          %s353 = scalar_lea.sflag [#allocation8], %s352
          %s354 = sand.u32 %s175, 1
          %s355 = smul.addr %s354, 256
          %s356 = scalar_lea.vmem [#allocation9], %s355
          %s357 = smul.u32 32, %s31
          %s359 = ssub.s32 4096, 4096
          %360 = vsyncadd %s353, %s359
          %s361 = smul.addr %s357, 128
          %s362 = scalar_lea.hbm %s5, %s361
          %s363 = sshll.u32 %s356, 4
          %s364 = int_to_ptr.vmem [resolvable:$true] %s363
          %369 = dma.hbm_to_vmem [thread:$0]  %s362, 4096, %s364, %s353, 128, 128, 8
        $region44: #{tpu_custom_call.1} parent=23 // pred_fallthru
          _
      $region24: #{tpu_custom_call.1} parent=5 // pred_fallthru
        _
      %p370 = scmp.le.s32.totalorder 1, %s23
      %p371 = scmp.lt.s32.totalorder %s23, 3
      %p372 = pnand %p370, %p371
      %p373 = pneg %p372
      // Predicated region
      $region45: #{tpu_custom_call.1} parent=5 // pred_check
        _
      $region46: #{tpu_custom_call.1} parent=5 // pred_check_branch
        %375 = sbr.rel (%p372) target = $region48
      $region47: #{tpu_custom_call.1} parent=5 // pred_region
        %s376 = ssub.s32 %s23, 1
        // Predicated region
        $region49: #{tpu_custom_call.1} parent=47 // pred_check
          %p377 = pneg %p61
        $region50: #{tpu_custom_call.1} parent=47 // pred_check_branch
          %379 = sbr.rel (%p377) target = $region52
        $region51: #{tpu_custom_call.1} parent=47 // pred_region
          %380 = dma.done [#allocation5], 512
        $region52: #{tpu_custom_call.1} parent=47 // pred_fallthru
          _
        %s381 = sand.u32 %s28, 1
        %s382 = scalar_lea.sflag [#allocation8], %s381
        %s383 = sand.u32 %s74, 1
        %s384 = smul.addr %s383, 256
        %s385 = scalar_lea.vmem [#allocation7], %s384
        // Predicated region
        $region53: #{tpu_custom_call.1} parent=47 // pred_check
          %p386 = pneg %p87
        $region54: #{tpu_custom_call.1} parent=47 // pred_check_branch
          %388 = sbr.rel (%p386) target = $region56
        $region55: #{tpu_custom_call.1} parent=47 // pred_region
          %389 = dma.done %s382, 4096
        $region56: #{tpu_custom_call.1} parent=47 // pred_fallthru
          _
        %s390 = sand.u32 %s28, 1
        %s391 = scalar_lea.sflag [#allocation8], %s390
        %s392 = sand.u32 %s178, 1
        %s393 = smul.addr %s392, 256
        %s394 = scalar_lea.vmem [#allocation9], %s393
        // Predicated region
        $region57: #{tpu_custom_call.1} parent=47 // pred_check
          %p395 = pneg %p191
        $region58: #{tpu_custom_call.1} parent=47 // pred_check_branch
          %397 = sbr.rel (%p395) target = $region60
        $region59: #{tpu_custom_call.1} parent=47 // pred_region
          %398 = dma.done %s391, 4096
        $region60: #{tpu_custom_call.1} parent=47 // pred_fallthru
          _
        %p399 = pneg %p61
        %p400 = pneg %p58
        %s401 = sand.u32 %s28, 1
        %s402 = scalar_lea.sflag [#allocation8], %s401
        %s403 = sand.u32 %s74, 1
        %s404 = smul.addr %s403, 256
        %s405 = scalar_lea.vmem [#allocation7], %s404
        %p406 = pneg %p87
        %p407 = pneg %p84
        %s408 = smul.u32 2, %s33
        %p409 = scmp.lt.s32.totalorder %s408, 3
        %s410 = scalar_select %p409, %s408, 3
        %s411 = scalar_lea.vmem %s2, %s410
        %p412 = pneg %p113
        %p413 = pneg %p110
        %s414 = smul.u32 2, %s33
        %p415 = scmp.lt.s32.totalorder %s414, 3
        %s416 = scalar_select %p415, %s414, 3
        %s417 = scalar_lea.vmem %s3, %s416
        %p418 = pneg %p139
        %p419 = pneg %p136
        %s420 = smul.u32 2, %s33
        %p421 = scmp.lt.s32.totalorder %s420, 3
        %s422 = scalar_select %p421, %s420, 3
        %s423 = scalar_lea.vmem %s4, %s422
        %p424 = pneg %p165
        %p425 = pneg %p162
        %s426 = sand.u32 %s28, 1
        %s427 = scalar_lea.sflag [#allocation8], %s426
        %s428 = sand.u32 %s178, 1
        %s429 = smul.addr %s428, 256
        %s430 = scalar_lea.vmem [#allocation9], %s429
        %p431 = pneg %p191
        %p432 = pneg %p188
        %p433 = pneg %p212
        %p434 = pneg %p209
        %p435 = pneg %p238
        %p436 = pneg %p235
        %p437 = pneg %p266
        %p438 = pneg %p263
        %s439 = sand.u32 %s253, 1
        %s440 = scalar_lea.sflag [#allocation12], %s439
        %s441 = sand.u32 %s253, 1
        %s442 = smul.addr %s441, 64
        %s443 = scalar_lea.vmem [#allocation11], %s442
        %s444 = smul.u32 4, %s32
        %s445 = smul.u32 2, %s33
        %s446 = smul.u32 2, %s33
        %p447 = scmp.lt.s32.totalorder %s446, 3
        %s448 = scalar_select %p447, %s446, 3
        %s449 = scalar_lea.vmem %s2, %s448
        %s450 = smul.u32 2, %s33
        %s451 = smul.u32 2, %s33
        %p452 = scmp.lt.s32.totalorder %s451, 3
        %s453 = scalar_select %p452, %s451, 3
        %s454 = scalar_lea.vmem %s3, %s453
        %s455 = smul.u32 2, %s33
        %s456 = smul.u32 2, %s33
        %p457 = scmp.lt.s32.totalorder %s456, 3
        %s458 = scalar_select %p457, %s456, 3
        %s459 = scalar_lea.vmem %s4, %s458
        %s460 = smul.u32 2, %s33
        %s461 = smul.u32 32, %s33
        %s462 = smul.u32 4, %s32
        %s463 = smul.u32 4, %s32
        %s464 = smul.u32 2, %s33
        %p465 = scmp.eq.s32.totalorder %s33, 0
        // Predicated region
        $region61: #{tpu_custom_call.1} parent=47 // pred_check
          %p466 = pneg %p465
        $region62: #{tpu_custom_call.1} parent=47 // pred_check_branch
          %468 = sbr.rel (%p466) target = $region64
        $region63: #{tpu_custom_call.1} parent=47 // pred_region
          %v469 = vld [vmem:[#allocation4] sm:$0xff]
          %v470 = vld [vmem:[#allocation4 + $0x8] sm:$0xff]
          %v471 = vld [vmem:[#allocation4 + $0x10] sm:$0xff]
          %v472 = vld [vmem:[#allocation4 + $0x18] sm:$0xff]
          %v473 = vld [vmem:[%s6] sm:$0x1]
          %v475 = vlaneseq
          %v476 = vshrl.u32 %v475, 7
          %v477 = vsub.s32 0, %v476
          %v478 = vrot.slane %v473, %v477
          %v480 = vsub.f32 %v469, %v478
          %v481 = vsub.f32 %v470, %v478
          %v482 = vsub.f32 %v471, %v478
          %v483 = vsub.f32 %v472, %v478
          %484 = vst [vmem:[#allocation3] sm:$0xff] %v480
          %485 = vst [vmem:[#allocation3 + $0x8] sm:$0xff] %v481
          %486 = vst [vmem:[#allocation3 + $0x10] sm:$0xff] %v482
          %487 = vst [vmem:[#allocation3 + $0x18] sm:$0xff] %v483
          %488 = vst [vmem:[#allocation2] sm:$0xff] 0.0
          %489 = vst [vmem:[#allocation2 + $0x8] sm:$0xff] 0.0
          %490 = vst [vmem:[#allocation2 + $0x10] sm:$0xff] 0.0
          %491 = vst [vmem:[#allocation2 + $0x18] sm:$0xff] 0.0
        $region64: #{tpu_custom_call.1} parent=47 // pred_fallthru
          _
        %v492 = vld [vmem:[#allocation3] sm:$0xff]
        %v493 = vld [vmem:[#allocation3 + $0x8] sm:$0xff]
        %v494 = vld [vmem:[#allocation3 + $0x10] sm:$0xff]
        %v495 = vld [vmem:[#allocation3 + $0x18] sm:$0xff]
        %v496 = vld [vmem:[%s385] sm:$0xff]
        %v497 = vld [vmem:[%s385 + $0x8] sm:$0xff]
        %v498 = vld [vmem:[%s385 + $0x10] sm:$0xff]
        %v499 = vld [vmem:[%s385 + $0x18] sm:$0xff]
        %v500 = vld [vmem:[%s385 + $0x20] sm:$0xff]
        %v501 = vld [vmem:[%s385 + $0x28] sm:$0xff]
        %v502 = vld [vmem:[%s385 + $0x30] sm:$0xff]
        %v503 = vld [vmem:[%s385 + $0x38] sm:$0xff]
        %v504 = vld [vmem:[%s385 + $0x40] sm:$0xff]
        %v505 = vld [vmem:[%s385 + $0x48] sm:$0xff]
        %v506 = vld [vmem:[%s385 + $0x50] sm:$0xff]
        %v507 = vld [vmem:[%s385 + $0x58] sm:$0xff]
        %v508 = vld [vmem:[%s385 + $0x60] sm:$0xff]
        %v509 = vld [vmem:[%s385 + $0x68] sm:$0xff]
        %v510 = vld [vmem:[%s385 + $0x70] sm:$0xff]
        %v511 = vld [vmem:[%s385 + $0x78] sm:$0xff]
        %v512 = vld [vmem:[%s385 + $0x80] sm:$0xff]
        %v513 = vld [vmem:[%s385 + $0x88] sm:$0xff]
        %v514 = vld [vmem:[%s385 + $0x90] sm:$0xff]
        %v515 = vld [vmem:[%s385 + $0x98] sm:$0xff]
        %v516 = vld [vmem:[%s385 + $0xa0] sm:$0xff]
        %v517 = vld [vmem:[%s385 + $0xa8] sm:$0xff]
        %v518 = vld [vmem:[%s385 + $0xb0] sm:$0xff]
        %v519 = vld [vmem:[%s385 + $0xb8] sm:$0xff]
        %v520 = vld [vmem:[%s385 + $0xc0] sm:$0xff]
        %v521 = vld [vmem:[%s385 + $0xc8] sm:$0xff]
        %v522 = vld [vmem:[%s385 + $0xd0] sm:$0xff]
        %v523 = vld [vmem:[%s385 + $0xd8] sm:$0xff]
        %v524 = vld [vmem:[%s385 + $0xe0] sm:$0xff]
        %v525 = vld [vmem:[%s385 + $0xe8] sm:$0xff]
        %v526 = vld [vmem:[%s385 + $0xf0] sm:$0xff]
        %v527 = vld [vmem:[%s385 + $0xf8] sm:$0xff]
        %v528 = vld [vmem:[%s449] sm:$0x3]
        %v530 = vlaneseq
        %v531 = vshrl.u32 %v530, 7
        %v532 = vsub.s32 0, %v531
        %v533 = vrot.slane %v528, %v532
        %v534 = vlaneseq
        %v535 = vshrl.u32 %v534, 7
        %v536 = vsub.s32 1, %v535
        %v537 = vrot.slane %v528, %v536
        %540 = vmatprep.subr.mxu0 %v497
        %541 = vmatpush1.msra.mxu0 %v496
        %542 = vmatprep.subr.mxu0 %v499
        %543 = vmatpush1.msra.mxu0 %v498
        %544 = vmatprep.subr.mxu0 %v501
        %545 = vmatpush1.msra.mxu0 %v500
        %546 = vmatprep.subr.mxu0 %v503
        %547 = vmatpush1.msra.mxu0 %v502
        %548 = vmatprep.subr.mxu0 %v505
        %549 = vmatpush1.msra.mxu0 %v504
        %550 = vmatprep.subr.mxu0 %v507
        %551 = vmatpush1.msra.mxu0 %v506
        %552 = vmatprep.subr.mxu0 %v509
        %553 = vmatpush1.msra.mxu0 %v508
        %554 = vmatprep.subr.mxu0 %v511
        %555 = vmatpush1.msra.mxu0 %v510
        %556 = vmatprep.subr.mxu0 %v513
        %557 = vmatpush1.msra.mxu0 %v512
        %558 = vmatprep.subr.mxu0 %v515
        %559 = vmatpush1.msra.mxu0 %v514
        %560 = vmatprep.subr.mxu0 %v517
        %561 = vmatpush1.msra.mxu0 %v516
        %562 = vmatprep.subr.mxu0 %v519
        %563 = vmatpush1.msra.mxu0 %v518
        %564 = vmatprep.subr.mxu0 %v521
        %565 = vmatpush1.msra.mxu0 %v520
        %566 = vmatprep.subr.mxu0 %v523
        %567 = vmatpush1.msra.mxu0 %v522
        %568 = vmatprep.subr.mxu0 %v525
        %569 = vmatpush1.msra.mxu0 %v524
        %570 = vmatprep.subr.mxu0 %v527
        %571 = vmatpush1.msra.mxu0 %v526
        %572 = vmatprep.subr.mxu0 0.0
        %573 = vmatpush1.msra.mxu0 0.0
        %574 = vmatprep.subr.mxu0 0.0
        %575 = vmatpush1.msra.mxu0 0.0
        %576 = vmatprep.subr.mxu0 0.0
        %577 = vmatpush1.msra.mxu0 0.0
        %578 = vmatprep.subr.mxu0 0.0
        %579 = vmatpush1.msra.mxu0 0.0
        %580 = vmatprep.subr.mxu0 0.0
        %581 = vmatpush1.msra.mxu0 0.0
        %582 = vmatprep.subr.mxu0 0.0
        %583 = vmatpush1.msra.mxu0 0.0
        %584 = vmatprep.subr.mxu0 0.0
        %585 = vmatpush1.msra.mxu0 0.0
        %586 = vmatprep.subr.mxu0 0.0
        %587 = vmatpush1.msra.mxu0 0.0
        %588 = vmatprep.subr.mxu0 0.0
        %589 = vmatpush1.msra.mxu0 0.0
        %590 = vmatprep.subr.mxu0 0.0
        %591 = vmatpush1.msra.mxu0 0.0
        %592 = vmatprep.subr.mxu0 0.0
        %593 = vmatpush1.msra.mxu0 0.0
        %594 = vmatprep.subr.mxu0 0.0
        %595 = vmatpush1.msra.mxu0 0.0
        %596 = vmatprep.subr.mxu0 0.0
        %597 = vmatpush1.msra.mxu0 0.0
        %598 = vmatprep.subr.mxu0 0.0
        %599 = vmatpush1.msra.mxu0 0.0
        %600 = vmatprep.subr.mxu0 0.0
        %601 = vmatpush1.msra.mxu0 0.0
        %602 = vmatprep.subr.mxu0 0.0
        %603 = vmatpush1.msra.mxu0 0.0
        %604 = vmatprep.mubr.f32.mxu0 0.0
        %605 = vmatmul.mubr.f32.gmra.mrb[0].mxu0 %v492
        %v606 = vpop.f32.mrb[0].mxu0
        %v607 = vadd.f32 %v533, %v606
        %v608 = vpop.f32.mrb[0].mxu0
        %v609 = vadd.f32 %v537, %v608
        %610 = vmatprep.mubr.f32.mxu0 0.0
        %611 = vmatmul.mubr.f32.gmra.mrb[0].mxu0 %v493
        %v612 = vpop.f32.mrb[0].mxu0
        %v613 = vadd.f32 %v533, %v612
        %v614 = vpop.f32.mrb[0].mxu0
        %v615 = vadd.f32 %v537, %v614
        %616 = vmatprep.mubr.f32.mxu0 0.0
        %617 = vmatmul.mubr.f32.gmra.mrb[0].mxu0 %v494
        %v618 = vpop.f32.mrb[0].mxu0
        %v619 = vadd.f32 %v533, %v618
        %v620 = vpop.f32.mrb[0].mxu0
        %v621 = vadd.f32 %v537, %v620
        %622 = vmatprep.mubr.f32.mxu0 0.0
        %623 = vmatmul.mubr.f32.gmra.mrb[0].mxu0 %v495
        %v624 = vpop.f32.mrb[0].mxu0
        %v625 = vadd.f32 %v533, %v624
        %v626 = vpop.f32.mrb[0].mxu0
        %v627 = vadd.f32 %v537, %v626
        %628 = vdwg.mxu0
        %v629 = vld [vmem:[%s454] sm:$0x3]
        %v631 = vlaneseq
        %v632 = vshrl.u32 %v631, 7
        %v633 = vsub.s32 0, %v632
        %v634 = vrot.slane %v629, %v633
        %v635 = vlaneseq
        %v636 = vshrl.u32 %v635, 7
        %v637 = vsub.s32 1, %v636
        %v638 = vrot.slane %v629, %v637
        %vm641 = vcmp.gt.f32.partialorder %v607, %v634
        %vm642 = vcmp.gt.f32.partialorder %v609, %v638
        %vm643 = vcmp.gt.f32.partialorder %v613, %v634
        %vm644 = vcmp.gt.f32.partialorder %v615, %v638
        %vm645 = vcmp.gt.f32.partialorder %v619, %v634
        %vm646 = vcmp.gt.f32.partialorder %v621, %v638
        %vm647 = vcmp.gt.f32.partialorder %v625, %v634
        %vm648 = vcmp.gt.f32.partialorder %v627, %v638
        %v649 = vmax.f32 %v607, 0.0
        %v650 = vmax.f32 %v609, 0.0
        %v651 = vmax.f32 %v613, 0.0
        %v652 = vmax.f32 %v615, 0.0
        %v653 = vmax.f32 %v619, 0.0
        %v654 = vmax.f32 %v621, 0.0
        %v655 = vmax.f32 %v625, 0.0
        %v656 = vmax.f32 %v627, 0.0
        %v657 = vsel %vm641, %v649, 0.0
        %v658 = vsel %vm642, %v650, 0.0
        %v659 = vsel %vm643, %v651, 0.0
        %v660 = vsel %vm644, %v652, 0.0
        %v661 = vsel %vm645, %v653, 0.0
        %v662 = vsel %vm646, %v654, 0.0
        %v663 = vsel %vm647, %v655, 0.0
        %v664 = vsel %vm648, %v656, 0.0
        %v665 = vld [vmem:[%s459] sm:$0x3]
        %v667 = vlaneseq
        %v668 = vshrl.u32 %v667, 7
        %v669 = vsub.s32 0, %v668
        %v670 = vrot.slane %v665, %v669
        %v671 = vlaneseq
        %v672 = vshrl.u32 %v671, 7
        %v673 = vsub.s32 1, %v672
        %v674 = vrot.slane %v665, %v673
        %v677 = vmul.f32 %v657, %v670
        %v678 = vmul.f32 %v658, %v674
        %v679 = vmul.f32 %v659, %v670
        %v680 = vmul.f32 %v660, %v674
        %v681 = vmul.f32 %v661, %v670
        %v682 = vmul.f32 %v662, %v674
        %v683 = vmul.f32 %v663, %v670
        %v684 = vmul.f32 %v664, %v674
        %685 = vst [vmem:[%s443] sm:$0xff] %v677
        %686 = vst [vmem:[%s443 + $0x8] sm:$0xff] %v678
        %687 = vst [vmem:[%s443 + $0x10] sm:$0xff] %v679
        %688 = vst [vmem:[%s443 + $0x18] sm:$0xff] %v680
        %689 = vst [vmem:[%s443 + $0x20] sm:$0xff] %v681
        %690 = vst [vmem:[%s443 + $0x28] sm:$0xff] %v682
        %691 = vst [vmem:[%s443 + $0x30] sm:$0xff] %v683
        %692 = vst [vmem:[%s443 + $0x38] sm:$0xff] %v684
        %v693 = vld [vmem:[#allocation2] sm:$0xff]
        %v694 = vld [vmem:[#allocation2 + $0x8] sm:$0xff]
        %v695 = vld [vmem:[#allocation2 + $0x10] sm:$0xff]
        %v696 = vld [vmem:[#allocation2 + $0x18] sm:$0xff]
        %v697 = vld [vmem:[%s394] sm:$0xff]
        %v698 = vld [vmem:[%s394 + $0x8] sm:$0xff]
        %v699 = vld [vmem:[%s394 + $0x10] sm:$0xff]
        %v700 = vld [vmem:[%s394 + $0x18] sm:$0xff]
        %v701 = vld [vmem:[%s394 + $0x20] sm:$0xff]
        %v702 = vld [vmem:[%s394 + $0x28] sm:$0xff]
        %v703 = vld [vmem:[%s394 + $0x30] sm:$0xff]
        %v704 = vld [vmem:[%s394 + $0x38] sm:$0xff]
        %v705 = vld [vmem:[%s394 + $0x40] sm:$0xff]
        %v706 = vld [vmem:[%s394 + $0x48] sm:$0xff]
        %v707 = vld [vmem:[%s394 + $0x50] sm:$0xff]
        %v708 = vld [vmem:[%s394 + $0x58] sm:$0xff]
        %v709 = vld [vmem:[%s394 + $0x60] sm:$0xff]
        %v710 = vld [vmem:[%s394 + $0x68] sm:$0xff]
        %v711 = vld [vmem:[%s394 + $0x70] sm:$0xff]
        %v712 = vld [vmem:[%s394 + $0x78] sm:$0xff]
        %v713 = vld [vmem:[%s394 + $0x80] sm:$0xff]
        %v714 = vld [vmem:[%s394 + $0x88] sm:$0xff]
        %v715 = vld [vmem:[%s394 + $0x90] sm:$0xff]
        %v716 = vld [vmem:[%s394 + $0x98] sm:$0xff]
        %v717 = vld [vmem:[%s394 + $0xa0] sm:$0xff]
        %v718 = vld [vmem:[%s394 + $0xa8] sm:$0xff]
        %v719 = vld [vmem:[%s394 + $0xb0] sm:$0xff]
        %v720 = vld [vmem:[%s394 + $0xb8] sm:$0xff]
        %v721 = vld [vmem:[%s394 + $0xc0] sm:$0xff]
        %v722 = vld [vmem:[%s394 + $0xc8] sm:$0xff]
        %v723 = vld [vmem:[%s394 + $0xd0] sm:$0xff]
        %v724 = vld [vmem:[%s394 + $0xd8] sm:$0xff]
        %v725 = vld [vmem:[%s394 + $0xe0] sm:$0xff]
        %v726 = vld [vmem:[%s394 + $0xe8] sm:$0xff]
        %v727 = vld [vmem:[%s394 + $0xf0] sm:$0xff]
        %v728 = vld [vmem:[%s394 + $0xf8] sm:$0xff]
        %729 = vmatprep.subr.mxu0 0.0
        %730 = vmatpush1.msra.mxu0 %v697
        %731 = vmatprep.subr.mxu0 0.0
        %732 = vmatpush1.msra.mxu0 %v698
        %733 = vmatprep.subr.mxu0 0.0
        %734 = vmatpush1.msra.mxu0 %v699
        %735 = vmatprep.subr.mxu0 0.0
        %736 = vmatpush1.msra.mxu0 %v700
        %737 = vmatprep.subr.mxu0 0.0
        %738 = vmatpush1.msra.mxu0 %v701
        %739 = vmatprep.subr.mxu0 0.0
        %740 = vmatpush1.msra.mxu0 %v702
        %741 = vmatprep.subr.mxu0 0.0
        %742 = vmatpush1.msra.mxu0 %v703
        %743 = vmatprep.subr.mxu0 0.0
        %744 = vmatpush1.msra.mxu0 %v704
        %745 = vmatprep.subr.mxu0 0.0
        %746 = vmatpush1.msra.mxu0 %v705
        %747 = vmatprep.subr.mxu0 0.0
        %748 = vmatpush1.msra.mxu0 %v706
        %749 = vmatprep.subr.mxu0 0.0
        %750 = vmatpush1.msra.mxu0 %v707
        %751 = vmatprep.subr.mxu0 0.0
        %752 = vmatpush1.msra.mxu0 %v708
        %753 = vmatprep.subr.mxu0 0.0
        %754 = vmatpush1.msra.mxu0 %v709
        %755 = vmatprep.subr.mxu0 0.0
        %756 = vmatpush1.msra.mxu0 %v710
        %757 = vmatprep.subr.mxu0 0.0
        %758 = vmatpush1.msra.mxu0 %v711
        %759 = vmatprep.subr.mxu0 0.0
        %760 = vmatpush1.msra.mxu0 %v712
        %761 = vmatprep.subr.mxu0 0.0
        %762 = vmatpush1.msra.mxu0 %v713
        %763 = vmatprep.subr.mxu0 0.0
        %764 = vmatpush1.msra.mxu0 %v714
        %765 = vmatprep.subr.mxu0 0.0
        %766 = vmatpush1.msra.mxu0 %v715
        %767 = vmatprep.subr.mxu0 0.0
        %768 = vmatpush1.msra.mxu0 %v716
        %769 = vmatprep.subr.mxu0 0.0
        %770 = vmatpush1.msra.mxu0 %v717
        %771 = vmatprep.subr.mxu0 0.0
        %772 = vmatpush1.msra.mxu0 %v718
        %773 = vmatprep.subr.mxu0 0.0
        %774 = vmatpush1.msra.mxu0 %v719
        %775 = vmatprep.subr.mxu0 0.0
        %776 = vmatpush1.msra.mxu0 %v720
        %777 = vmatprep.subr.mxu0 0.0
        %778 = vmatpush1.msra.mxu0 %v721
        %779 = vmatprep.subr.mxu0 0.0
        %780 = vmatpush1.msra.mxu0 %v722
        %781 = vmatprep.subr.mxu0 0.0
        %782 = vmatpush1.msra.mxu0 %v723
        %783 = vmatprep.subr.mxu0 0.0
        %784 = vmatpush1.msra.mxu0 %v724
        %785 = vmatprep.subr.mxu0 0.0
        %786 = vmatpush1.msra.mxu0 %v725
        %787 = vmatprep.subr.mxu0 0.0
        %788 = vmatpush1.msra.mxu0 %v726
        %789 = vmatprep.subr.mxu0 0.0
        %790 = vmatpush1.msra.mxu0 %v727
        %791 = vmatprep.subr.mxu0 0.0
        %792 = vmatpush1.msra.mxu0 %v728
        %793 = vmatprep.mubr.f32.mxu0 %v658
        %794 = vmatmul.mubr.f32.gmra.mrb[0].mxu0 %v657
        %v795 = vpop.f32.mrb[0].mxu0
        %v796 = vadd.f32 0.0, %v795
        %v797 = vpop.f32.mrb[0].mxu0
        %798 = vmatprep.mubr.f32.mxu0 %v660
        %799 = vmatmul.mubr.f32.gmra.mrb[0].mxu0 %v659
        %v800 = vpop.f32.mrb[0].mxu0
        %v801 = vadd.f32 0.0, %v800
        %v802 = vpop.f32.mrb[0].mxu0
        %803 = vmatprep.mubr.f32.mxu0 %v662
        %804 = vmatmul.mubr.f32.gmra.mrb[0].mxu0 %v661
        %v805 = vpop.f32.mrb[0].mxu0
        %v806 = vadd.f32 0.0, %v805
        %v807 = vpop.f32.mrb[0].mxu0
        %808 = vmatprep.mubr.f32.mxu0 %v664
        %809 = vmatmul.mubr.f32.gmra.mrb[0].mxu0 %v663
        %v810 = vpop.f32.mrb[0].mxu0
        %v811 = vadd.f32 0.0, %v810
        %v812 = vpop.f32.mrb[0].mxu0
        %813 = vdwg.mxu0
        %v814 = vadd.f32 %v693, %v796
        %v815 = vadd.f32 %v694, %v801
        %v816 = vadd.f32 %v695, %v806
        %v817 = vadd.f32 %v696, %v811
        %818 = vst [vmem:[#allocation2] sm:$0xff] %v814
        %819 = vst [vmem:[#allocation2 + $0x8] sm:$0xff] %v815
        %820 = vst [vmem:[#allocation2 + $0x10] sm:$0xff] %v816
        %821 = vst [vmem:[#allocation2 + $0x18] sm:$0xff] %v817
        %p822 = scmp.eq.s32.totalorder %s33, 1
        // Predicated region
        $region65: #{tpu_custom_call.1} parent=47 // pred_check
          %p823 = pneg %p822
        $region66: #{tpu_custom_call.1} parent=47 // pred_check_branch
          %825 = sbr.rel (%p823) target = $region68
        $region67: #{tpu_custom_call.1} parent=47 // pred_region
          %v826 = vld [vmem:[#allocation2] sm:$0xff]
          %v827 = vld [vmem:[#allocation2 + $0x8] sm:$0xff]
          %v828 = vld [vmem:[#allocation2 + $0x10] sm:$0xff]
          %v829 = vld [vmem:[#allocation2 + $0x18] sm:$0xff]
          %v830 = vld [vmem:[%s6] sm:$0x1]
          %v832 = vlaneseq
          %v833 = vshrl.u32 %v832, 7
          %v834 = vsub.s32 0, %v833
          %v835 = vrot.slane %v830, %v834
          %v837 = vadd.f32 %v826, %v835
          %v838 = vadd.f32 %v827, %v835
          %v839 = vadd.f32 %v828, %v835
          %v840 = vadd.f32 %v829, %v835
          %841 = vst [vmem:[#allocation10] sm:$0xff] %v837
          %842 = vst [vmem:[#allocation10 + $0x8] sm:$0xff] %v838
          %843 = vst [vmem:[#allocation10 + $0x10] sm:$0xff] %v839
          %844 = vst [vmem:[#allocation10 + $0x18] sm:$0xff] %v840
        $region68: #{tpu_custom_call.1} parent=47 // pred_fallthru
          _
        %s845 = sand.u32 %s253, 1
        %s846 = scalar_lea.sflag [#allocation12], %s845
        %s847 = sand.u32 %s253, 1
        %s848 = smul.addr %s847, 64
        %s849 = scalar_lea.vmem [#allocation11], %s848
        // Predicated region
        $region69: #{tpu_custom_call.1} parent=47 // pred_check
          %p850 = pneg %p235
        $region70: #{tpu_custom_call.1} parent=47 // pred_check_branch
          %852 = sbr.rel (%p850) target = $region72
        $region71: #{tpu_custom_call.1} parent=47 // pred_region
          %s853 = smul.u32 4, %s32
          %s855 = ssub.s32 512, 512
          %856 = vsyncadd [#allocation6], %s855
          %s857 = smul.addr %s853, 128
          %s858 = scalar_lea.hbm %s7, %s857
          %s859 = sshll.u32 [#allocation10], 4
          %s860 = int_to_ptr.vmem [resolvable:$true] %s859
          %865 = dma.vmem_to_hbm [thread:$0]  %s860, 512, %s858, [#allocation6], 128, 128, 8
        $region72: #{tpu_custom_call.1} parent=47 // pred_fallthru
          _
        // Predicated region
        $region73: #{tpu_custom_call.1} parent=47 // pred_check
          %p866 = pneg %p263
        $region74: #{tpu_custom_call.1} parent=47 // pred_check_branch
          %868 = sbr.rel (%p866) target = $region76
        $region75: #{tpu_custom_call.1} parent=47 // pred_region
          %s869 = smul.u32 4, %s32
          %s870 = smul.u32 2, %s33
          %s872 = ssub.s32 1024, 1024
          %873 = vsyncadd %s846, %s872
          %s874 = smul.addr %s869, 4
          %s875 = sadd.s32 %s870, %s874
          %s876 = smul.addr %s875, 128
          %s877 = scalar_lea.hbm %s8, %s876
          %s878 = sshll.u32 %s849, 4
          %s879 = int_to_ptr.vmem [resolvable:$true] %s878
          %884 = dma.vmem_to_hbm [thread:$0]  %s879, 1024, %s877, %s846, 256, 512, 16
        $region76: #{tpu_custom_call.1} parent=47 // pred_fallthru
          _
        // Predicated region
        $region77: #{tpu_custom_call.1} parent=47 // pred_check
          %p885 = pneg %p235
        $region78: #{tpu_custom_call.1} parent=47 // pred_check_branch
          %887 = sbr.rel (%p885) target = $region80
        $region79: #{tpu_custom_call.1} parent=47 // pred_region
          %888 = dma.done [#allocation6], 512
        $region80: #{tpu_custom_call.1} parent=47 // pred_fallthru
          _
      $region48: #{tpu_custom_call.1} parent=5 // pred_fallthru
        _
      %p889 = scmp.le.s32.totalorder 2, %s23
      // Predicated region
      $region81: #{tpu_custom_call.1} parent=5 // pred_check
        %p890 = pneg %p889
      $region82: #{tpu_custom_call.1} parent=5 // pred_check_branch
        %892 = sbr.rel (%p890) target = $region84
      $region83: #{tpu_custom_call.1} parent=5 // pred_region
        %s893 = ssub.s32 %s23, 2
        // Predicated region
        $region85: #{tpu_custom_call.1} parent=83 // pred_check
          %p894 = pneg %p269
        $region86: #{tpu_custom_call.1} parent=83 // pred_check_branch
          %896 = sbr.rel (%p894) target = $region88
        $region87: #{tpu_custom_call.1} parent=83 // pred_region
          %s897 = sand.u32 %s254, 1
          %s898 = scalar_lea.sflag [#allocation12], %s897
          %s899 = sand.u32 %s254, 1
          %s900 = smul.addr %s899, 64
          %s901 = scalar_lea.vmem [#allocation11], %s900
          %902 = dma.done %s898, 1024
        $region88: #{tpu_custom_call.1} parent=83 // pred_fallthru
          _
      $region84: #{tpu_custom_call.1} parent=5 // pred_fallthru
        _
    $region6: #{tpu_custom_call.1} parent=1 // loop_footer
      %s27 = sadd.s32 1, %s23
    $region7: #{tpu_custom_call.1} parent=1 // loop_footer_branch
      %22 = sbr.rel target = $region3
    $region8: #{tpu_custom_call.1} parent=1 // loop_exit
      _
    %903 = vsyncpa [#allocation5], 1
    %s904 = scalar_lea.sflag [#allocation5], 1
    %905 = vsyncpa %s904, 1
    %906 = vsyncpa [#allocation8], 1
    %s907 = scalar_lea.sflag [#allocation8], 1
    %908 = vsyncpa %s907, 1
    %909 = vsyncpa [#allocation6], 1
    %s910 = scalar_lea.sflag [#allocation6], 1
    %911 = vsyncpa %s910, 1
    %912 = vsyncpa [#allocation12], 1
    %s913 = scalar_lea.sflag [#allocation12], 1
    %914 = vsyncpa %s913, 1

</llo_original>
